<compile_context>
chip_gen: v6e
topology: v6e:2x2x1
jax: 0.10.0
libtpu: 0.0.40
codegen_flags: <defaults>
</compile_context>

<pallas_src>
import jax
import jax.numpy as jnp
from jax.experimental import pallas as pl
from jax.experimental.pallas import tpu as pltpu

# ---------------------------------------------------------------------------
# Model hyper-parameters (small, consistent with the module's forward)
# ---------------------------------------------------------------------------
B, CIN, H, W = 2, 4, 16, 16      # input  [B, CIN, H, W]  (NCHW, PyTorch convention)
COUT = 8                         # conv output channels
KH = KW = 3                      # conv kernel (pad=1, stride=1)
FEAT = 32                        # encoder output_dim
NCLS = 10                        # decoder num classes
HW = H * W                       # 256 valid pixels per image
NPIX = B * HW                    # 512 = exact multiple of 128 lanes
NKK = KH * KW                    # 9 taps
KDIM = NKK * CIN                 # 36 im2col rows
KAUG = 40                        # + ones row (bias) + pad to a sublane multiple

# Packed-parameter slab layout (rows, lane width = KAUG; all blocks lane-0 aligned)
ROW_WC = 0                       # [8, 40]  conv weight (cols 0:36) + conv bias (col 36)
ROW_W1 = 8                       # [32, 9]  W1^T (cols 0:8) + b1 column (col 8)
ROW_W2 = 40                      # [32, 33] W2^T (cols 0:32) + b2 column (col 32)
ROW_W3 = 72                      # [10, 33] W3^T (cols 0:32) + b3 column (col 32)
PROWS = 88                       # padded to a multiple of 8 sublanes


# ---------------------------------------------------------------------------
# The single fused kernel
#   conv(+bias) as ONE matmul + ReLU -> lane-dense acts [COUT, 512]
#   global average pool via per-batch cross-lane reductions -> [COUT, B]
#   Linear(8->32)+ReLU -> Linear(32->32)+ReLU -> Linear(32->10), transposed layout
# ---------------------------------------------------------------------------
def fused_forward_kernel(x_ref, p_ref, o_ref):
    # x_ref: [KAUG, NPIX] augmented im2col slab (row KDIM is all-ones -> conv bias)
    # p_ref: [PROWS, KAUG] packed parameters
    # o_ref: [NCLS, B] logits (transposed; wrapper flips to [B, NCLS])

    # Conv 3x3 (pad=1) + bias + ReLU as a single MXU matmul, 512 dense lanes.
    wc = p_ref[ROW_WC:ROW_WC + COUT, :]                                      # [8, 40]
    acts = jnp.maximum(
        jnp.dot(wc, x_ref[...], preferred_element_type=jnp.float32), 0.0)    # [8, 512]

    # Global average pool: lane-tile-aligned per-batch slices + XLU lane reductions.
    cols = [jnp.sum(acts[:, b * HW:(b + 1) * HW], axis=1, keepdims=True)
            for b in range(B)]                                               # B x [8, 1]
    pooled_t = jnp.concatenate(cols, axis=1) * (1.0 / HW)                    # [COUT, B]

    # MLP head in [feature, batch] orientation (pre-transposed weights, column biases).
    w1t = p_ref[ROW_W1:ROW_W1 + FEAT, 0:COUT]
    b1c = p_ref[ROW_W1:ROW_W1 + FEAT, COUT:COUT + 1]
    w2t = p_ref[ROW_W2:ROW_W2 + FEAT, 0:FEAT]
    b2c = p_ref[ROW_W2:ROW_W2 + FEAT, FEAT:FEAT + 1]
    w3t = p_ref[ROW_W3:ROW_W3 + NCLS, 0:FEAT]
    b3c = p_ref[ROW_W3:ROW_W3 + NCLS, FEAT:FEAT + 1]

    h = jnp.maximum(jnp.dot(w1t, pooled_t,
                            preferred_element_type=jnp.float32) + b1c, 0.0)  # [32, B]
    h = jnp.maximum(jnp.dot(w2t, h,
                            preferred_element_type=jnp.float32) + b2c, 0.0)  # [32, B]
    o_ref[...] = jnp.dot(w3t, h,
                         preferred_element_type=jnp.float32) + b3c           # [10, B]


def _fused_pallas(xslab, pslab):
    return pl.pallas_call(
        fused_forward_kernel,
        out_shape=jax.ShapeDtypeStruct((NCLS, B), jnp.float32),
        in_specs=[pl.BlockSpec(memory_space=pltpu.MemorySpace.VMEM)] * 2,
        out_specs=pl.BlockSpec(memory_space=pltpu.MemorySpace.VMEM),
    )(xslab, pslab)


# ---------------------------------------------------------------------------
# One-time host-side parameter packing into a single slab
# ---------------------------------------------------------------------------
def prepare_kernel_params(params):
    # conv weight OIHW -> [COUT, (kh,kw,c)] so column index = k*CIN + c
    wc = jnp.transpose(params["w_conv"], (0, 2, 3, 1)).reshape(COUT, KDIM)   # [8, 36]
    slab = jnp.zeros((PROWS, KAUG), jnp.float32)
    slab = slab.at[ROW_WC:ROW_WC + COUT, 0:KDIM].set(wc)
    slab = slab.at[ROW_WC:ROW_WC + COUT, KDIM].set(params["b_conv"])
    slab = slab.at[ROW_W1:ROW_W1 + FEAT, 0:COUT].set(params["w1"].T)         # [32, 8]
    slab = slab.at[ROW_W1:ROW_W1 + FEAT, COUT].set(params["b1"].reshape(FEAT))
    slab = slab.at[ROW_W2:ROW_W2 + FEAT, 0:FEAT].set(params["w2"].T)         # [32, 32]
    slab = slab.at[ROW_W2:ROW_W2 + FEAT, FEAT].set(params["b2"].reshape(FEAT))
    slab = slab.at[ROW_W3:ROW_W3 + NCLS, 0:FEAT].set(params["w3"].T)         # [10, 32]
    slab = slab.at[ROW_W3:ROW_W3 + NCLS, FEAT].set(params["b3"].reshape(NCLS))
    return slab


# ---------------------------------------------------------------------------
# Forward: NCHW -> augmented im2col slab (layout plumbing, fuses in jit) -> kernel
# ---------------------------------------------------------------------------
@jax.jit
def single_model_forward(x_nchw, pslab):
    xpad = jnp.pad(x_nchw, ((0, 0), (0, 0), (1, 1), (1, 1)))                 # [B,CIN,18,18]
    taps = [xpad[:, :, kh:kh + H, kw:kw + W]
            for kh in range(KH) for kw in range(KW)]                         # 9 x [B,CIN,H,W]
    xcol = jnp.stack(taps, axis=0)                                           # [9,B,CIN,H,W]
    xcol = jnp.transpose(xcol, (0, 2, 1, 3, 4)).reshape(KDIM, NPIX)          # [36, 512]
    xslab = jnp.concatenate(
        [xcol,
         jnp.ones((1, NPIX), jnp.float32),                                   # folds conv bias
         jnp.zeros((KAUG - KDIM - 1, NPIX), jnp.float32)], axis=0)           # [40, 512]
    return _fused_pallas(xslab, pslab).T                                     # [B, NCLS]


# ---------------------------------------------------------------------------
# Pure-JAX reference (independent path: lax.conv) for the correctness check
# ---------------------------------------------------------------------------
def reference_forward(x_nchw, params):
    hp = jax.lax.Precision.HIGHEST
    y = jax.lax.conv_general_dilated(
        x_nchw, params["w_conv"], window_strides=(1, 1), padding=((1, 1), (1, 1)),
        dimension_numbers=("NCHW", "OIHW", "NCHW"), precision=hp)
    y = jnp.maximum(y + params["b_conv"].reshape(1, COUT, 1, 1), 0.0)
    pooled = jnp.mean(y, axis=(2, 3))                                        # [B, COUT]
    h = jnp.maximum(jnp.dot(pooled, params["w1"], precision=hp) + params["b1"], 0.0)
    h = jnp.maximum(jnp.dot(h, params["w2"], precision=hp) + params["b2"], 0.0)
    return jnp.dot(h, params["w3"], precision=hp) + params["b3"]


# ---------------------------------------------------------------------------
# Deterministic parameter initialization (PyTorch-style layouts)
# ---------------------------------------------------------------------------
def init_params(key):
    ks = jax.random.split(key, 8)
    w_conv = 0.1 * jax.random.normal(ks[0], (COUT, CIN, KH, KW), jnp.float32)  # OIHW
    b_conv = 0.05 * jax.random.normal(ks[1], (COUT,), jnp.float32)
    w1 = 0.1 * jax.random.normal(ks[2], (COUT, FEAT), jnp.float32)
    b1 = 0.05 * jax.random.normal(ks[3], (1, FEAT), jnp.float32)
    w2 = 0.1 * jax.random.normal(ks[4], (FEAT, FEAT), jnp.float32)
    b2 = 0.05 * jax.random.normal(ks[5], (1, FEAT), jnp.float32)
    w3 = 0.1 * jax.random.normal(ks[6], (FEAT, NCLS), jnp.float32)
    b3 = 0.05 * jax.random.normal(ks[7], (1, NCLS), jnp.float32)
    return dict(w_conv=w_conv, b_conv=b_conv, w1=w1, b1=b1, w2=w2, b2=b2, w3=w3, b3=b3)


if __name__ == "__main__":
    key = jax.random.PRNGKey(0)
    k_x, k_p = jax.random.split(key)
    x = jax.random.normal(k_x, (B, CIN, H, W), jnp.float32)      # NCHW input, like PyTorch
    params = init_params(k_p)
    pslab = prepare_kernel_params(params)

    out = single_model_forward(x, pslab)
    out = jax.block_until_ready(out)

    ref = reference_forward(x, params)
    assert out.shape == (B, NCLS)
    assert jnp.allclose(out, ref, atol=1e-3, rtol=1e-3), "Pallas output mismatch vs reference"

    print("KERNEL_OK")
</pallas_src>

<mosaic_0001>
module attributes {stable_mosaic.version = 11 : i64} {
  func.func @fused_forward_kernel(%arg0: memref<40x512xf32, #tpu.memory_space<vmem>>, %arg1: memref<88x40xf32, #tpu.memory_space<vmem>>, %arg2: memref<10x2xf32, #tpu.memory_space<vmem>>) attributes {dimension_semantics = [], scalar_prefetch = 0 : i64, scratch_operands = 0 : i64, tpu.core_type = #tpu.core_type<tc>} {
    %c0 = arith.constant 0 : index
    %c0_0 = arith.constant 0 : index
    %0 = vector.load %arg1[%c0, %c0_0] : memref<88x40xf32, #tpu.memory_space<vmem>>, vector<8x40xf32>
    %c0_1 = arith.constant 0 : index
    %c0_2 = arith.constant 0 : index
    %1 = vector.load %arg0[%c0_1, %c0_2] : memref<40x512xf32, #tpu.memory_space<vmem>>, vector<40x512xf32>
    %cst = arith.constant dense<0.000000e+00> : vector<8x512xf32>
    %2 = tpu.matmul %0, %1, %cst {dimension_numbers = #tpu.dot_dimension_numbers<[1], [0], [0], [1], [0, 0, 1, 1], [], []>} : vector<8x40xf32>, vector<40x512xf32>, vector<8x512xf32> -> vector<8x512xf32>
    %cst_3 = arith.constant 0.000000e+00 : f32
    %3 = vector.broadcast %cst_3 : f32 to vector<8x512xf32>
    %4 = arith.maximumf %2, %3 : vector<8x512xf32>
    %5 = vector.extract_strided_slice %4 {offsets = [0, 0], sizes = [8, 256], strides = [1, 1]} : vector<8x512xf32> to vector<8x256xf32>
    %cst_4 = arith.constant dense<0.000000e+00> : vector<8xf32>
    %6 = vector.multi_reduction <add>, %5, %cst_4 [1] : vector<8x256xf32> to vector<8xf32>
    %7 = vector.shape_cast %6 : vector<8xf32> to vector<8x1xf32>
    %8 = vector.extract_strided_slice %4 {offsets = [0, 256], sizes = [8, 256], strides = [1, 1]} : vector<8x512xf32> to vector<8x256xf32>
    %cst_5 = arith.constant dense<0.000000e+00> : vector<8xf32>
    %9 = vector.multi_reduction <add>, %8, %cst_5 [1] : vector<8x256xf32> to vector<8xf32>
    %10 = vector.shape_cast %9 : vector<8xf32> to vector<8x1xf32>
    %11 = tpu.concatenate %7, %10 in 1 : vector<8x1xf32>, vector<8x1xf32> -> vector<8x2xf32>
    %cst_6 = arith.constant 3.906250e-03 : f32
    %12 = vector.broadcast %cst_6 : f32 to vector<8x2xf32>
    %13 = arith.mulf %11, %12 : vector<8x2xf32>
    %c8 = arith.constant 8 : index
    %c0_7 = arith.constant 0 : index
    %14 = vector.load %arg1[%c8, %c0_7] : memref<88x40xf32, #tpu.memory_space<vmem>>, vector<32x8xf32>
    %c8_8 = arith.constant 8 : index
    %c8_9 = arith.constant 8 : index
    %15 = vector.load %arg1[%c8_8, %c8_9] : memref<88x40xf32, #tpu.memory_space<vmem>>, vector<32x1xf32>
    %c40 = arith.constant 40 : index
    %c0_10 = arith.constant 0 : index
    %16 = vector.load %arg1[%c40, %c0_10] : memref<88x40xf32, #tpu.memory_space<vmem>>, vector<32x32xf32>
    %c40_11 = arith.constant 40 : index
    %c32 = arith.constant 32 : index
    %17 = vector.load %arg1[%c40_11, %c32] : memref<88x40xf32, #tpu.memory_space<vmem>>, vector<32x1xf32>
    %c72 = arith.constant 72 : index
    %c0_12 = arith.constant 0 : index
    %18 = vector.load %arg1[%c72, %c0_12] : memref<88x40xf32, #tpu.memory_space<vmem>>, vector<10x32xf32>
    %c72_13 = arith.constant 72 : index
    %c32_14 = arith.constant 32 : index
    %19 = vector.load %arg1[%c72_13, %c32_14] : memref<88x40xf32, #tpu.memory_space<vmem>>, vector<10x1xf32>
    %cst_15 = arith.constant dense<0.000000e+00> : vector<32x2xf32>
    %20 = tpu.matmul %14, %13, %cst_15 {dimension_numbers = #tpu.dot_dimension_numbers<[1], [0], [0], [1], [0, 0, 1, 1], [], []>} : vector<32x8xf32>, vector<8x2xf32>, vector<32x2xf32> -> vector<32x2xf32>
    %21 = vector.broadcast %15 : vector<32x1xf32> to vector<32x2xf32>
    %22 = arith.addf %20, %21 : vector<32x2xf32>
    %cst_16 = arith.constant 0.000000e+00 : f32
    %23 = vector.broadcast %cst_16 : f32 to vector<32x2xf32>
    %24 = arith.maximumf %22, %23 : vector<32x2xf32>
    %cst_17 = arith.constant dense<0.000000e+00> : vector<32x2xf32>
    %25 = tpu.matmul %16, %24, %cst_17 {dimension_numbers = #tpu.dot_dimension_numbers<[1], [0], [0], [1], [0, 0, 1, 1], [], []>} : vector<32x32xf32>, vector<32x2xf32>, vector<32x2xf32> -> vector<32x2xf32>
    %26 = vector.broadcast %17 : vector<32x1xf32> to vector<32x2xf32>
    %27 = arith.addf %25, %26 : vector<32x2xf32>
    %cst_18 = arith.constant 0.000000e+00 : f32
    %28 = vector.broadcast %cst_18 : f32 to vector<32x2xf32>
    %29 = arith.maximumf %27, %28 : vector<32x2xf32>
    %cst_19 = arith.constant dense<0.000000e+00> : vector<10x2xf32>
    %30 = tpu.matmul %18, %29, %cst_19 {dimension_numbers = #tpu.dot_dimension_numbers<[1], [0], [0], [1], [0, 0, 1, 1], [], []>} : vector<10x32xf32>, vector<32x2xf32>, vector<10x2xf32> -> vector<10x2xf32>
    %31 = vector.broadcast %19 : vector<10x1xf32> to vector<10x2xf32>
    %32 = arith.addf %30, %31 : vector<10x2xf32>
    %c0_20 = arith.constant 0 : index
    %c0_21 = arith.constant 0 : index
    %33 = vector.load %arg2[%c0_20, %c0_21] : memref<10x2xf32, #tpu.memory_space<vmem>>, vector<10x2xf32>
    tpu.vector_store %arg2[%c0_20, %c0_21], %32 {strides = array<i32>} : memref<10x2xf32, #tpu.memory_space<vmem>>, vector<10x2xf32>,
    return
  }
}

</mosaic_0001>

<llo_original>
// kernel: single_model_forward.1
$region0: #{single_model_forward.1}
  #allocation0 [shape = 'u32[]', space=smem, size = 0x4, offset = 0x4, fixed_abs, tag = 'smem constant byte address 0x4 - core index']
  #allocation1 [shape = 'u32[144,128]{1,0:T(1,128)}', space=vmem, size = 0x12000, scoped, tag = 'internal scratch']
  %s0 = inlined_call_operand.vmem [shape: f32[40,512], index: 0, kind: input, shape index: {}]
  %s1 = inlined_call_operand.vmem [shape: f32[88,40], index: 1, kind: input, shape index: {}]
  %s2 = inlined_call_operand.vmem [shape: f32[10,2], index: 2, kind: output, shape index: {}]
  %s3 = sld [smem:[#allocation0]]
  $region18: #{single_model_forward.1} parent=0
    _
  %s5 = ssub.s32 1, %s3
  %s6 = scalar_select 0, %s5, %s3
  // Predicated region
  $region2: #{single_model_forward.1} parent=0 // pred_check
    _
  $region3: #{single_model_forward.1} parent=0 // pred_check_branch
    %8 = sbr.rel (0) target = $region5
  $region4: #{single_model_forward.1} parent=0 // pred_region
    _
  $region5: #{single_model_forward.1} parent=0 // pred_fallthru
    _
  // Predicated region
  $region6: #{single_model_forward.1} parent=0 // pred_check
    _
  $region7: #{single_model_forward.1} parent=0 // pred_check_branch
    %10 = sbr.rel (0) target = $region9
  $region8: #{single_model_forward.1} parent=0 // pred_region
    _
  $region9: #{single_model_forward.1} parent=0 // pred_fallthru
    _
  %v11 = vld [vmem:[%s1] sm:$0xff]
  %v12 = vld [vmem:[%s0] sm:$0xff]
  %v13 = vld [vmem:[%s0 + $0x8] sm:$0xff]
  %v14 = vld [vmem:[%s0 + $0x10] sm:$0xff]
  %v15 = vld [vmem:[%s0 + $0x18] sm:$0xff]
  %v16 = vld [vmem:[%s0 + $0x20] sm:$0xff]
  %v17 = vld [vmem:[%s0 + $0x28] sm:$0xff]
  %v18 = vld [vmem:[%s0 + $0x30] sm:$0xff]
  %v19 = vld [vmem:[%s0 + $0x38] sm:$0xff]
  %v20 = vld [vmem:[%s0 + $0x40] sm:$0xff]
  %v21 = vld [vmem:[%s0 + $0x48] sm:$0xff]
  %v22 = vld [vmem:[%s0 + $0x50] sm:$0xff]
  %v23 = vld [vmem:[%s0 + $0x58] sm:$0xff]
  %v24 = vld [vmem:[%s0 + $0x60] sm:$0xff]
  %v25 = vld [vmem:[%s0 + $0x68] sm:$0xff]
  %v26 = vld [vmem:[%s0 + $0x70] sm:$0xff]
  %v27 = vld [vmem:[%s0 + $0x78] sm:$0xff]
  %v28 = vld [vmem:[%s0 + $0x80] sm:$0xff]
  %v29 = vld [vmem:[%s0 + $0x88] sm:$0xff]
  %v30 = vld [vmem:[%s0 + $0x90] sm:$0xff]
  %v31 = vld [vmem:[%s0 + $0x98] sm:$0xff]
  %vm32 = vcmask 326656
  %v34 = vsel %vm32, %v11, 0
  %36 = vmatprep.subr.mxu0 0.0
  %37 = vmatpush1.msra.mxu0 0.0
  %38 = vmatprep.subr.mxu0 0.0
  %39 = vmatpush1.msra.mxu0 0.0
  %40 = vmatprep.subr.mxu0 0.0
  %41 = vmatpush1.msra.mxu0 0.0
  %42 = vmatprep.subr.mxu0 0.0
  %43 = vmatpush1.msra.mxu0 0.0
  %44 = vmatprep.subr.mxu0 0.0
  %45 = vmatpush1.msra.mxu0 0.0
  %46 = vmatprep.subr.mxu0 0.0
  %47 = vmatpush1.msra.mxu0 0.0
  %48 = vmatprep.subr.mxu0 0.0
  %49 = vmatpush1.msra.mxu0 0.0
  %50 = vmatprep.subr.mxu0 0.0
  %51 = vmatpush1.msra.mxu0 0.0
  %52 = vmatprep.subr.mxu0 0.0
  %53 = vmatpush1.msra.mxu0 0.0
  %54 = vmatprep.subr.mxu0 0.0
  %55 = vmatpush1.msra.mxu0 0.0
  %56 = vmatprep.subr.mxu0 0.0
  %57 = vmatpush1.msra.mxu0 0.0
  %58 = vmatprep.subr.mxu0 %v29
  %59 = vmatpush1.msra.mxu0 %v28
  %60 = vmatprep.subr.mxu0 %v25
  %61 = vmatpush1.msra.mxu0 %v24
  %62 = vmatprep.subr.mxu0 %v21
  %63 = vmatpush1.msra.mxu0 %v20
  %64 = vmatprep.subr.mxu0 %v17
  %65 = vmatpush1.msra.mxu0 %v16
  %66 = vmatprep.subr.mxu0 %v13
  %67 = vmatpush1.msra.mxu0 %v12
  %68 = vmatprep.subr.mxu0 0.0
  %69 = vmatpush2.msra.mxu0 0.0
  %70 = vmatprep.subr.mxu0 0.0
  %71 = vmatpush2.msra.mxu0 0.0
  %72 = vmatprep.subr.mxu0 0.0
  %73 = vmatpush2.msra.mxu0 0.0
  %74 = vmatprep.subr.mxu0 0.0
  %75 = vmatpush2.msra.mxu0 0.0
  %76 = vmatprep.subr.mxu0 0.0
  %77 = vmatpush2.msra.mxu0 0.0
  %78 = vmatprep.subr.mxu0 0.0
  %79 = vmatpush2.msra.mxu0 0.0
  %80 = vmatprep.subr.mxu0 0.0
  %81 = vmatpush2.msra.mxu0 0.0
  %82 = vmatprep.subr.mxu0 0.0
  %83 = vmatpush2.msra.mxu0 0.0
  %84 = vmatprep.subr.mxu0 0.0
  %85 = vmatpush2.msra.mxu0 0.0
  %86 = vmatprep.subr.mxu0 0.0
  %87 = vmatpush2.msra.mxu0 0.0
  %88 = vmatprep.subr.mxu0 0.0
  %89 = vmatpush2.msra.mxu0 0.0
  %90 = vmatprep.subr.mxu0 0.0
  %91 = vmatpush2.msra.mxu0 0.0
  %92 = vmatprep.subr.mxu0 0.0
  %93 = vmatpush2.msra.mxu0 0.0
  %94 = vmatprep.subr.mxu0 0.0
  %95 = vmatpush2.msra.mxu0 0.0
  %96 = vmatprep.subr.mxu0 0.0
  %97 = vmatpush2.msra.mxu0 0.0
  %98 = vmatprep.subr.mxu0 0.0
  %99 = vmatpush2.msra.mxu0 0.0
  %100 = vmatprep.mubr.f32.mxu0 0.0
  %101 = vmatmul.mubr.f32.gmra.mxu0 %v34
  %v102 = vpop.f32.mrf.mxu0
  %v103 = vadd.f32 0.0, %v102
  %v104 = vpop.f32.mrf.mxu0
  %v105 = vadd.f32 0.0, %v104
  %106 = vdwg.mxu0
  %107 = vmatprep.subr.mxu0 0.0
  %108 = vmatpush1.msra.mxu0 0.0
  %109 = vmatprep.subr.mxu0 0.0
  %110 = vmatpush1.msra.mxu0 0.0
  %111 = vmatprep.subr.mxu0 0.0
  %112 = vmatpush1.msra.mxu0 0.0
  %113 = vmatprep.subr.mxu0 0.0
  %114 = vmatpush1.msra.mxu0 0.0
  %115 = vmatprep.subr.mxu0 0.0
  %116 = vmatpush1.msra.mxu0 0.0
  %117 = vmatprep.subr.mxu0 0.0
  %118 = vmatpush1.msra.mxu0 0.0
  %119 = vmatprep.subr.mxu0 0.0
  %120 = vmatpush1.msra.mxu0 0.0
  %121 = vmatprep.subr.mxu0 0.0
  %122 = vmatpush1.msra.mxu0 0.0
  %123 = vmatprep.subr.mxu0 0.0
  %124 = vmatpush1.msra.mxu0 0.0
  %125 = vmatprep.subr.mxu0 0.0
  %126 = vmatpush1.msra.mxu0 0.0
  %127 = vmatprep.subr.mxu0 0.0
  %128 = vmatpush1.msra.mxu0 0.0
  %129 = vmatprep.subr.mxu0 %v31
  %130 = vmatpush1.msra.mxu0 %v30
  %131 = vmatprep.subr.mxu0 %v27
  %132 = vmatpush1.msra.mxu0 %v26
  %133 = vmatprep.subr.mxu0 %v23
  %134 = vmatpush1.msra.mxu0 %v22
  %135 = vmatprep.subr.mxu0 %v19
  %136 = vmatpush1.msra.mxu0 %v18
  %137 = vmatprep.subr.mxu0 %v15
  %138 = vmatpush1.msra.mxu0 %v14
  %139 = vmatprep.subr.mxu0 0.0
  %140 = vmatpush2.msra.mxu0 0.0
  %141 = vmatprep.subr.mxu0 0.0
  %142 = vmatpush2.msra.mxu0 0.0
  %143 = vmatprep.subr.mxu0 0.0
  %144 = vmatpush2.msra.mxu0 0.0
  %145 = vmatprep.subr.mxu0 0.0
  %146 = vmatpush2.msra.mxu0 0.0
  %147 = vmatprep.subr.mxu0 0.0
  %148 = vmatpush2.msra.mxu0 0.0
  %149 = vmatprep.subr.mxu0 0.0
  %150 = vmatpush2.msra.mxu0 0.0
  %151 = vmatprep.subr.mxu0 0.0
  %152 = vmatpush2.msra.mxu0 0.0
  %153 = vmatprep.subr.mxu0 0.0
  %154 = vmatpush2.msra.mxu0 0.0
  %155 = vmatprep.subr.mxu0 0.0
  %156 = vmatpush2.msra.mxu0 0.0
  %157 = vmatprep.subr.mxu0 0.0
  %158 = vmatpush2.msra.mxu0 0.0
  %159 = vmatprep.subr.mxu0 0.0
  %160 = vmatpush2.msra.mxu0 0.0
  %161 = vmatprep.subr.mxu0 0.0
  %162 = vmatpush2.msra.mxu0 0.0
  %163 = vmatprep.subr.mxu0 0.0
  %164 = vmatpush2.msra.mxu0 0.0
  %165 = vmatprep.subr.mxu0 0.0
  %166 = vmatpush2.msra.mxu0 0.0
  %167 = vmatprep.subr.mxu0 0.0
  %168 = vmatpush2.msra.mxu0 0.0
  %169 = vmatprep.subr.mxu0 0.0
  %170 = vmatpush2.msra.mxu0 0.0
  %171 = vmatprep.mubr.f32.mxu0 0.0
  %172 = vmatmul.mubr.f32.gmra.mxu0 %v34
  %v173 = vpop.f32.mrf.mxu0
  %v174 = vadd.f32 0.0, %v173
  %v175 = vpop.f32.mrf.mxu0
  %v176 = vadd.f32 0.0, %v175
  %177 = vdwg.mxu0
  %v178 = vmax.f32 %v103, 0.0
  %v179 = vmax.f32 %v105, 0.0
  %v180 = vmax.f32 %v174, 0.0
  %v181 = vmax.f32 %v176, 0.0
  %v182 = vadd.f32 %v178, %v179
  %183 = vadd.xlane.f32.xlu0 %v182
  %v184 = vpop.xlane.xlu0 %183
  %v185 = vadd.f32 %v180, %v181
  %186 = vadd.xlane.f32.xlu0 %v185
  %v187 = vpop.xlane.xlu0 %186
  %vm188 = vcmask 7168
  %v189 = vsel %vm188, %v184, %v187
  %v190 = vmul.f32 %v189, 0.00390625
  %v191 = vld [vmem:[%s1 + $0x8] sm:$0xff]
  %v192 = vld [vmem:[%s1 + $0x10] sm:$0xff]
  %v193 = vld [vmem:[%s1 + $0x18] sm:$0xff]
  %v194 = vld [vmem:[%s1 + $0x20] sm:$0xff]
  %v195 = vld [vmem:[%s1 + $0x28] sm:$0xff]
  %v196 = vld [vmem:[%s1 + $0x30] sm:$0xff]
  %v197 = vld [vmem:[%s1 + $0x38] sm:$0xff]
  %v198 = vld [vmem:[%s1 + $0x40] sm:$0xff]
  %v199 = vld [vmem:[%s1 + $0x48] sm:$0xff]
  %v200 = vld [vmem:[%s1 + $0x50] sm:$0x3]
  %202 = vset.pattern.permute.xlu0 8
  %203 = vperm.xlu0 %202, %v191
  %v204 = vpop.permute.xlu0 %203
  %207 = vset.pattern.permute.xlu0 8
  %208 = vperm.xlu0 %207, %v192
  %v209 = vpop.permute.xlu0 %208
  %212 = vset.pattern.permute.xlu0 8
  %213 = vperm.xlu0 %212, %v193
  %v214 = vpop.permute.xlu0 %213
  %217 = vset.pattern.permute.xlu0 8
  %218 = vperm.xlu0 %217, %v194
  %v219 = vpop.permute.xlu0 %218
  %vm221 = vcmask 64512
  %v222 = vsel %vm221, %v191, 0
  %v224 = vsel %vm221, %v192, 0
  %v226 = vsel %vm221, %v193, 0
  %v228 = vsel %vm221, %v194, 0
  %230 = vmatprep.subr.mxu0 0.0
  %231 = vmatpush1.msra.mxu0 0.0
  %232 = vmatprep.subr.mxu0 0.0
  %233 = vmatpush1.msra.mxu0 0.0
  %234 = vmatprep.subr.mxu0 0.0
  %235 = vmatpush1.msra.mxu0 0.0
  %236 = vmatprep.subr.mxu0 0.0
  %237 = vmatpush1.msra.mxu0 0.0
  %238 = vmatprep.subr.mxu0 0.0
  %239 = vmatpush1.msra.mxu0 0.0
  %240 = vmatprep.subr.mxu0 0.0
  %241 = vmatpush1.msra.mxu0 0.0
  %242 = vmatprep.subr.mxu0 0.0
  %243 = vmatpush1.msra.mxu0 0.0
  %244 = vmatprep.subr.mxu0 0.0
  %245 = vmatpush1.msra.mxu0 0.0
  %246 = vmatprep.subr.mxu0 0.0
  %247 = vmatpush1.msra.mxu0 0.0
  %248 = vmatprep.subr.mxu0 0.0
  %249 = vmatpush1.msra.mxu0 0.0
  %250 = vmatprep.subr.mxu0 0.0
  %251 = vmatpush1.msra.mxu0 0.0
  %252 = vmatprep.subr.mxu0 0.0
  %253 = vmatpush1.msra.mxu0 0.0
  %254 = vmatprep.subr.mxu0 0.0
  %255 = vmatpush1.msra.mxu0 0.0
  %256 = vmatprep.subr.mxu0 0.0
  %257 = vmatpush1.msra.mxu0 0.0
  %258 = vmatprep.subr.mxu0 0.0
  %259 = vmatpush1.msra.mxu0 0.0
  %260 = vmatprep.subr.mxu0 0.0
  %261 = vmatpush1.msra.mxu0 %v190
  %262 = vmatprep.subr.mxu0 0.0
  %263 = vmatpush2.msra.mxu0 0.0
  %264 = vmatprep.subr.mxu0 0.0
  %265 = vmatpush2.msra.mxu0 0.0
  %266 = vmatprep.subr.mxu0 0.0
  %267 = vmatpush2.msra.mxu0 0.0
  %268 = vmatprep.subr.mxu0 0.0
  %269 = vmatpush2.msra.mxu0 0.0
  %270 = vmatprep.subr.mxu0 0.0
  %271 = vmatpush2.msra.mxu0 0.0
  %272 = vmatprep.subr.mxu0 0.0
  %273 = vmatpush2.msra.mxu0 0.0
  %274 = vmatprep.subr.mxu0 0.0
  %275 = vmatpush2.msra.mxu0 0.0
  %276 = vmatprep.subr.mxu0 0.0
  %277 = vmatpush2.msra.mxu0 0.0
  %278 = vmatprep.subr.mxu0 0.0
  %279 = vmatpush2.msra.mxu0 0.0
  %280 = vmatprep.subr.mxu0 0.0
  %281 = vmatpush2.msra.mxu0 0.0
  %282 = vmatprep.subr.mxu0 0.0
  %283 = vmatpush2.msra.mxu0 0.0
  %284 = vmatprep.subr.mxu0 0.0
  %285 = vmatpush2.msra.mxu0 0.0
  %286 = vmatprep.subr.mxu0 0.0
  %287 = vmatpush2.msra.mxu0 0.0
  %288 = vmatprep.subr.mxu0 0.0
  %289 = vmatpush2.msra.mxu0 0.0
  %290 = vmatprep.subr.mxu0 0.0
  %291 = vmatpush2.msra.mxu0 0.0
  %292 = vmatprep.subr.mxu0 0.0
  %293 = vmatpush2.msra.mxu0 0.0
  %294 = vmatprep.mubr.f32.mxu0 0.0
  %295 = vmatmul.mubr.f32.gmra.mxu0 %v222
  %v296 = vpop.f32.mrf.mxu0
  %v297 = vadd.f32 %v204, %v296
  %v298 = vpop.f32.mrf.mxu0
  %299 = vmatprep.mubr.f32.mxu0 0.0
  %300 = vmatmul.mubr.f32.gmra.mxu0 %v224
  %v301 = vpop.f32.mrf.mxu0
  %v302 = vadd.f32 %v209, %v301
  %v303 = vpop.f32.mrf.mxu0
  %304 = vmatprep.mubr.f32.mxu0 0.0
  %305 = vmatmul.mubr.f32.gmra.mxu0 %v226
  %v306 = vpop.f32.mrf.mxu0
  %v307 = vadd.f32 %v214, %v306
  %v308 = vpop.f32.mrf.mxu0
  %309 = vmatprep.mubr.f32.mxu0 0.0
  %310 = vmatmul.mubr.f32.gmra.mxu0 %v228
  %v311 = vpop.f32.mrf.mxu0
  %v312 = vadd.f32 %v219, %v311
  %v313 = vpop.f32.mrf.mxu0
  %314 = vdwg.mxu0
  %v315 = vmax.f32 %v297, 0.0
  %v316 = vmax.f32 %v302, 0.0
  %v317 = vmax.f32 %v307, 0.0
  %v318 = vmax.f32 %v312, 0.0
  %320 = vset.pattern.permute.xlu0 32
  %321 = vperm.xlu0 %320, %v195
  %v322 = vpop.permute.xlu0 %321
  %325 = vset.pattern.permute.xlu0 32
  %326 = vperm.xlu0 %325, %v196
  %v327 = vpop.permute.xlu0 %326
  %330 = vset.pattern.permute.xlu0 32
  %331 = vperm.xlu0 %330, %v197
  %v332 = vpop.permute.xlu0 %331
  %335 = vset.pattern.permute.xlu0 32
  %336 = vperm.xlu0 %335, %v198
  %v337 = vpop.permute.xlu0 %336
  %vm339 = vcmask 261120
  %v340 = vsel %vm339, %v195, 0
  %v342 = vsel %vm339, %v196, 0
  %v344 = vsel %vm339, %v197, 0
  %v346 = vsel %vm339, %v198, 0
  %348 = vmatprep.subr.mxu0 0.0
  %349 = vmatpush1.msra.mxu0 0.0
  %350 = vmatprep.subr.mxu0 0.0
  %351 = vmatpush1.msra.mxu0 0.0
  %352 = vmatprep.subr.mxu0 0.0
  %353 = vmatpush1.msra.mxu0 0.0
  %354 = vmatprep.subr.mxu0 0.0
  %355 = vmatpush1.msra.mxu0 0.0
  %356 = vmatprep.subr.mxu0 0.0
  %357 = vmatpush1.msra.mxu0 0.0
  %358 = vmatprep.subr.mxu0 0.0
  %359 = vmatpush1.msra.mxu0 0.0
  %360 = vmatprep.subr.mxu0 0.0
  %361 = vmatpush1.msra.mxu0 0.0
  %362 = vmatprep.subr.mxu0 0.0
  %363 = vmatpush1.msra.mxu0 0.0
  %364 = vmatprep.subr.mxu0 0.0
  %365 = vmatpush1.msra.mxu0 0.0
  %366 = vmatprep.subr.mxu0 0.0
  %367 = vmatpush1.msra.mxu0 0.0
  %368 = vmatprep.subr.mxu0 0.0
  %369 = vmatpush1.msra.mxu0 0.0
  %370 = vmatprep.subr.mxu0 0.0
  %371 = vmatpush1.msra.mxu0 0.0
  %372 = vmatprep.subr.mxu0 0.0
  %373 = vmatpush1.msra.mxu0 %v318
  %374 = vmatprep.subr.mxu0 0.0
  %375 = vmatpush1.msra.mxu0 %v317
  %376 = vmatprep.subr.mxu0 0.0
  %377 = vmatpush1.msra.mxu0 %v316
  %378 = vmatprep.subr.mxu0 0.0
  %379 = vmatpush1.msra.mxu0 %v315
  %380 = vmatprep.subr.mxu0 0.0
  %381 = vmatpush2.msra.mxu0 0.0
  %382 = vmatprep.subr.mxu0 0.0
  %383 = vmatpush2.msra.mxu0 0.0
  %384 = vmatprep.subr.mxu0 0.0
  %385 = vmatpush2.msra.mxu0 0.0
  %386 = vmatprep.subr.mxu0 0.0
  %387 = vmatpush2.msra.mxu0 0.0
  %388 = vmatprep.subr.mxu0 0.0
  %389 = vmatpush2.msra.mxu0 0.0
  %390 = vmatprep.subr.mxu0 0.0
  %391 = vmatpush2.msra.mxu0 0.0
  %392 = vmatprep.subr.mxu0 0.0
  %393 = vmatpush2.msra.mxu0 0.0
  %394 = vmatprep.subr.mxu0 0.0
  %395 = vmatpush2.msra.mxu0 0.0
  %396 = vmatprep.subr.mxu0 0.0
  %397 = vmatpush2.msra.mxu0 0.0
  %398 = vmatprep.subr.mxu0 0.0
  %399 = vmatpush2.msra.mxu0 0.0
  %400 = vmatprep.subr.mxu0 0.0
  %401 = vmatpush2.msra.mxu0 0.0
  %402 = vmatprep.subr.mxu0 0.0
  %403 = vmatpush2.msra.mxu0 0.0
  %404 = vmatprep.subr.mxu0 0.0
  %405 = vmatpush2.msra.mxu0 0.0
  %406 = vmatprep.subr.mxu0 0.0
  %407 = vmatpush2.msra.mxu0 0.0
  %408 = vmatprep.subr.mxu0 0.0
  %409 = vmatpush2.msra.mxu0 0.0
  %410 = vmatprep.subr.mxu0 0.0
  %411 = vmatpush2.msra.mxu0 0.0
  %412 = vmatprep.mubr.f32.mxu0 0.0
  %413 = vmatmul.mubr.f32.gmra.mxu0 %v340
  %v414 = vpop.f32.mrf.mxu0
  %v415 = vadd.f32 %v322, %v414
  %v416 = vpop.f32.mrf.mxu0
  %417 = vmatprep.mubr.f32.mxu0 0.0
  %418 = vmatmul.mubr.f32.gmra.mxu0 %v342
  %v419 = vpop.f32.mrf.mxu0
  %v420 = vadd.f32 %v327, %v419
  %v421 = vpop.f32.mrf.mxu0
  %422 = vmatprep.mubr.f32.mxu0 0.0
  %423 = vmatmul.mubr.f32.gmra.mxu0 %v344
  %v424 = vpop.f32.mrf.mxu0
  %v425 = vadd.f32 %v332, %v424
  %v426 = vpop.f32.mrf.mxu0
  %427 = vmatprep.mubr.f32.mxu0 0.0
  %428 = vmatmul.mubr.f32.gmra.mxu0 %v346
  %v429 = vpop.f32.mrf.mxu0
  %v430 = vadd.f32 %v337, %v429
  %v431 = vpop.f32.mrf.mxu0
  %432 = vdwg.mxu0
  %v433 = vmax.f32 %v415, 0.0
  %v434 = vmax.f32 %v420, 0.0
  %v435 = vmax.f32 %v425, 0.0
  %v436 = vmax.f32 %v430, 0.0
  %438 = vset.pattern.permute.xlu0 32
  %439 = vperm.xlu0 %438, %v199
  %v440 = vpop.permute.xlu0 %439
  %443 = vset.pattern.permute.xlu0 32
  %444 = vperm.xlu0 %443, %v200
  %v445 = vpop.permute.xlu0 %444
  %v447 = vsel %vm339, %v199, 0
  %v449 = vsel %vm339, %v200, 0
  %451 = vmatprep.subr.mxu0 0.0
  %452 = vmatpush1.msra.mxu0 0.0
  %453 = vmatprep.subr.mxu0 0.0
  %454 = vmatpush1.msra.mxu0 0.0
  %455 = vmatprep.subr.mxu0 0.0
  %456 = vmatpush1.msra.mxu0 0.0
  %457 = vmatprep.subr.mxu0 0.0
  %458 = vmatpush1.msra.mxu0 0.0
  %459 = vmatprep.subr.mxu0 0.0
  %460 = vmatpush1.msra.mxu0 0.0
  %461 = vmatprep.subr.mxu0 0.0
  %462 = vmatpush1.msra.mxu0 0.0
  %463 = vmatprep.subr.mxu0 0.0
  %464 = vmatpush1.msra.mxu0 0.0
  %465 = vmatprep.subr.mxu0 0.0
  %466 = vmatpush1.msra.mxu0 0.0
  %467 = vmatprep.subr.mxu0 0.0
  %468 = vmatpush1.msra.mxu0 0.0
  %469 = vmatprep.subr.mxu0 0.0
  %470 = vmatpush1.msra.mxu0 0.0
  %471 = vmatprep.subr.mxu0 0.0
  %472 = vmatpush1.msra.mxu0 0.0
  %473 = vmatprep.subr.mxu0 0.0
  %474 = vmatpush1.msra.mxu0 0.0
  %475 = vmatprep.subr.mxu0 0.0
  %476 = vmatpush1.msra.mxu0 %v436
  %477 = vmatprep.subr.mxu0 0.0
  %478 = vmatpush1.msra.mxu0 %v435
  %479 = vmatprep.subr.mxu0 0.0
  %480 = vmatpush1.msra.mxu0 %v434
  %481 = vmatprep.subr.mxu0 0.0
  %482 = vmatpush1.msra.mxu0 %v433
  %483 = vmatprep.subr.mxu0 0.0
  %484 = vmatpush2.msra.mxu0 0.0
  %485 = vmatprep.subr.mxu0 0.0
  %486 = vmatpush2.msra.mxu0 0.0
  %487 = vmatprep.subr.mxu0 0.0
  %488 = vmatpush2.msra.mxu0 0.0
  %489 = vmatprep.subr.mxu0 0.0
  %490 = vmatpush2.msra.mxu0 0.0
  %491 = vmatprep.subr.mxu0 0.0
  %492 = vmatpush2.msra.mxu0 0.0
  %493 = vmatprep.subr.mxu0 0.0
  %494 = vmatpush2.msra.mxu0 0.0
  %495 = vmatprep.subr.mxu0 0.0
  %496 = vmatpush2.msra.mxu0 0.0
  %497 = vmatprep.subr.mxu0 0.0
  %498 = vmatpush2.msra.mxu0 0.0
  %499 = vmatprep.subr.mxu0 0.0
  %500 = vmatpush2.msra.mxu0 0.0
  %501 = vmatprep.subr.mxu0 0.0
  %502 = vmatpush2.msra.mxu0 0.0
  %503 = vmatprep.subr.mxu0 0.0
  %504 = vmatpush2.msra.mxu0 0.0
  %505 = vmatprep.subr.mxu0 0.0
  %506 = vmatpush2.msra.mxu0 0.0
  %507 = vmatprep.subr.mxu0 0.0
  %508 = vmatpush2.msra.mxu0 0.0
  %509 = vmatprep.subr.mxu0 0.0
  %510 = vmatpush2.msra.mxu0 0.0
  %511 = vmatprep.subr.mxu0 0.0
  %512 = vmatpush2.msra.mxu0 0.0
  %513 = vmatprep.subr.mxu0 0.0
  %514 = vmatpush2.msra.mxu0 0.0
  %515 = vmatprep.mubr.f32.mxu0 0.0
  %516 = vmatmul.mubr.f32.gmra.mxu0 %v447
  %v517 = vpop.f32.mrf.mxu0
  %v518 = vadd.f32 %v440, %v517
  %v519 = vpop.f32.mrf.mxu0
  %520 = vmatprep.mubr.f32.mxu0 0.0
  %521 = vmatmul.mubr.f32.gmra.mxu0 %v449
  %v522 = vpop.f32.mrf.mxu0
  %v523 = vadd.f32 %v445, %v522
  %v524 = vpop.f32.mrf.mxu0
  %525 = vdwg.mxu0
  %vm526 = vcmask 15360
  %527 = vst.msk [vmem:[%s2] sm:$0xff] %vm526, %v518
  %vm528 = vcmask 9216
  %529 = vst.msk [vmem:[%s2 + $0x8] sm:$0x3] %vm528, %v523
  // Predicated region
  $region10: #{single_model_forward.1} parent=0 // pred_check
    _
  $region11: #{single_model_forward.1} parent=0 // pred_check_branch
    %531 = sbr.rel (0) target = $region13
  $region12: #{single_model_forward.1} parent=0 // pred_region
    _
  $region13: #{single_model_forward.1} parent=0 // pred_fallthru
    _
  // Predicated region
  $region14: #{single_model_forward.1} parent=0 // pred_check
    _
  $region15: #{single_model_forward.1} parent=0 // pred_check_branch
    %533 = sbr.rel (0) target = $region17
  $region16: #{single_model_forward.1} parent=0 // pred_region
    _
  $region17: #{single_model_forward.1} parent=0 // pred_fallthru
    _

</llo_original>
